<compile_context>
chip_gen: v7x
topology: tpu7x:2x2x1
jax: 0.10.0
libtpu: 0.0.40
codegen_flags: <defaults>
</compile_context>

<pallas_src>
import functools

import jax
import jax.numpy as jnp
from jax.experimental import pallas as pl
from jax.experimental.pallas import tpu as pltpu


def _iou_loss_kernel(pt_ref, out_ref, *, loss_type):
    # pt_ref: (8, T) tile; rows 0-3 = pred [cx, cy, w, h], rows 4-7 = target.
    pt = pt_ref[...]

    pxy, pwh = pt[0:2, :], pt[2:4, :]          # (2, T)
    txy, twh = pt[4:6, :], pt[6:8, :]          # (2, T)

    p_half = pwh * 0.5
    t_half = twh * 0.5

    tl = jnp.maximum(pxy - p_half, txy - t_half)   # (2, T)
    br = jnp.minimum(pxy + p_half, txy + t_half)   # (2, T)

    area_p = pwh[0:1, :] * pwh[1:2, :]             # (1, T)
    area_g = twh[0:1, :] * twh[1:2, :]             # (1, T)

    # Intersection: positive only when the boxes overlap on both axes.
    d = br - tl                                    # (2, T)
    valid = (d[0:1, :] > 0.0) & (d[1:2, :] > 0.0)  # (1, T)
    area_i = jnp.where(valid, d[0:1, :] * d[1:2, :], 0.0)

    area_u = area_p + area_g - area_i
    iou = area_i / (area_u + 1e-16)

    if loss_type == "iou":
        loss = 1.0 - iou * iou
    elif loss_type == "giou":
        c_tl = jnp.minimum(pxy - p_half, txy - t_half)
        c_br = jnp.maximum(pxy + p_half, txy + t_half)
        c_d = c_br - c_tl
        area_c = c_d[0:1, :] * c_d[1:2, :]
        area_c = jnp.maximum(area_c, 1e-16)        # clamp(1e-16)
        giou = iou - (area_c - area_u) / area_c
        giou = jnp.clip(giou, -1.0, 1.0)
        loss = 1.0 - giou
    else:
        raise ValueError(f"unknown loss_type: {loss_type}")

    out_ref[...] = loss


def iou_loss(pred, target, reduction="none", loss_type="iou", tile=2048):
    assert pred.shape[0] == target.shape[0]
    pred = pred.reshape(-1, 4).astype(jnp.float32)
    target = target.reshape(-1, 4).astype(jnp.float32)
    n = pred.shape[0]

    # Pick the lane tile: multiple of 128, no bigger than the padded box count.
    n_128 = ((n + 127) // 128) * 128
    tile = max(128, min(tile, n_128))
    tile = ((tile + 127) // 128) * 128
    n_pad = ((n + tile - 1) // tile) * tile

    # Stack pred+target into one (8, N) array (full 8-sublane vreg occupancy),
    # then pad the lane axis once. Padded boxes are all-zero (sliced off below).
    pt = jnp.concatenate([pred.T, target.T], axis=0)          # (8, N)
    pt = jnp.pad(pt, ((0, 0), (0, n_pad - n)))                # (8, N_pad)

    kernel = functools.partial(_iou_loss_kernel, loss_type=loss_type)

    out = pl.pallas_call(
        kernel,
        out_shape=jax.ShapeDtypeStruct((1, n_pad), jnp.float32),
        grid=(n_pad // tile,),
        in_specs=[
            pl.BlockSpec((8, tile), lambda i: (0, i)),
        ],
        out_specs=pl.BlockSpec((1, tile), lambda i: (0, i)),
        compiler_params=pltpu.CompilerParams(
            dimension_semantics=("parallel",)
        ),
    )(pt)

    loss = out[0, :n]
    if reduction == "mean":
        loss = loss.mean()
    elif reduction == "sum":
        loss = loss.sum()
    return loss


def _iou_loss_ref(pred, target, reduction="none", loss_type="iou"):
    # Pure-JAX reference mirroring the PyTorch forward.
    pred = pred.reshape(-1, 4).astype(jnp.float32)
    target = target.reshape(-1, 4).astype(jnp.float32)
    tl = jnp.maximum(pred[:, :2] - pred[:, 2:] / 2, target[:, :2] - target[:, 2:] / 2)
    br = jnp.minimum(pred[:, :2] + pred[:, 2:] / 2, target[:, :2] + target[:, 2:] / 2)
    area_p = jnp.prod(pred[:, 2:], axis=1)
    area_g = jnp.prod(target[:, 2:], axis=1)
    en = jnp.prod((tl < br).astype(tl.dtype), axis=1)
    area_i = jnp.prod(br - tl, axis=1) * en
    area_u = area_p + area_g - area_i
    iou = area_i / (area_u + 1e-16)
    if loss_type == "iou":
        loss = 1 - iou ** 2
    elif loss_type == "giou":
        c_tl = jnp.minimum(pred[:, :2] - pred[:, 2:] / 2, target[:, :2] - target[:, 2:] / 2)
        c_br = jnp.maximum(pred[:, :2] + pred[:, 2:] / 2, target[:, :2] + target[:, 2:] / 2)
        area_c = jnp.prod(c_br - c_tl, axis=1)
        giou = iou - (area_c - area_u) / jnp.maximum(area_c, 1e-16)
        loss = 1 - jnp.clip(giou, -1.0, 1.0)
    if reduction == "mean":
        loss = loss.mean()
    elif reduction == "sum":
        loss = loss.sum()
    return loss


def _make_boxes(key, n_boxes):
    k1, k2, k3, k4 = jax.random.split(key, 4)
    pred = jnp.concatenate(
        [jax.random.uniform(k1, (n_boxes, 2), minval=0.0, maxval=16.0),
         jax.random.uniform(k2, (n_boxes, 2), minval=1.0, maxval=8.0)], axis=1)
    target = jnp.concatenate(
        [jax.random.uniform(k3, (n_boxes, 2), minval=0.0, maxval=16.0),
         jax.random.uniform(k4, (n_boxes, 2), minval=1.0, maxval=8.0)], axis=1)
    return pred, target


if __name__ == "__main__":
    key = jax.random.PRNGKey(0)
    k_small, k_multi = jax.random.split(key)

    ok = True

    # Small case: (N, 4) boxes with N=8 (single grid step after tile clamp).
    pred_s, target_s = _make_boxes(k_small, 8)
    for loss_type in ("iou", "giou"):
        for reduction in ("none", "mean", "sum"):
            out = jax.block_until_ready(
                iou_loss(pred_s, target_s, reduction=reduction, loss_type=loss_type))
            ref = _iou_loss_ref(pred_s, target_s, reduction=reduction, loss_type=loss_type)
            if not jnp.allclose(out, ref, rtol=1e-5, atol=1e-5):
                ok = False

    # Slightly larger case with an explicit small tile to exercise a multi-step
    # grid (and the padded tail) while keeping shapes small.
    pred_m, target_m = _make_boxes(k_multi, 300)
    for loss_type in ("iou", "giou"):
        out = jax.block_until_ready(
            iou_loss(pred_m, target_m, reduction="none", loss_type=loss_type, tile=128))
        ref = _iou_loss_ref(pred_m, target_m, reduction="none", loss_type=loss_type)
        if not jnp.allclose(out, ref, rtol=1e-5, atol=1e-5):
            ok = False

    if ok:
        print("KERNEL_OK")
    else:
        print("KERNEL_MISMATCH")
</pallas_src>

<mosaic_0001>
module attributes {stable_mosaic.version = 11 : i64} {
  func.func @_iou_loss_kernel(%arg0: i32, %arg1: memref<8x128xf32, #tpu.memory_space<vmem>>, %arg2: memref<1x128xf32, #tpu.memory_space<vmem>>) attributes {dimension_semantics = [#tpu.dimension_semantics<parallel>], iteration_bounds = array<i64: 1>, scalar_prefetch = 0 : i64, scratch_operands = 0 : i64, tpu.core_type = #tpu.core_type<tc>, window_params = [{transform_indices = @transform_0, window_bounds = array<i64: 8, 128>}, {transform_indices = @transform_1, window_bounds = array<i64: 1, 128>}]} {
    %c0 = arith.constant 0 : index
    %c0_0 = arith.constant 0 : index
    %0 = vector.load %arg1[%c0, %c0_0] : memref<8x128xf32, #tpu.memory_space<vmem>>, vector<8x128xf32>
    %1 = vector.extract_strided_slice %0 {offsets = [0, 0], sizes = [2, 128], strides = [1, 1]} : vector<8x128xf32> to vector<2x128xf32>
    %2 = vector.extract_strided_slice %0 {offsets = [2, 0], sizes = [2, 128], strides = [1, 1]} : vector<8x128xf32> to vector<2x128xf32>
    %3 = vector.extract_strided_slice %0 {offsets = [4, 0], sizes = [2, 128], strides = [1, 1]} : vector<8x128xf32> to vector<2x128xf32>
    %4 = vector.extract_strided_slice %0 {offsets = [6, 0], sizes = [2, 128], strides = [1, 1]} : vector<8x128xf32> to vector<2x128xf32>
    %cst = arith.constant 5.000000e-01 : f32
    %5 = vector.broadcast %cst : f32 to vector<2x128xf32>
    %6 = arith.mulf %2, %5 : vector<2x128xf32>
    %cst_1 = arith.constant 5.000000e-01 : f32
    %7 = vector.broadcast %cst_1 : f32 to vector<2x128xf32>
    %8 = arith.mulf %4, %7 : vector<2x128xf32>
    %9 = arith.subf %1, %6 : vector<2x128xf32>
    %10 = arith.subf %3, %8 : vector<2x128xf32>
    %11 = arith.maximumf %9, %10 : vector<2x128xf32>
    %12 = arith.addf %1, %6 : vector<2x128xf32>
    %13 = arith.addf %3, %8 : vector<2x128xf32>
    %14 = arith.minimumf %12, %13 : vector<2x128xf32>
    %15 = vector.extract_strided_slice %2 {offsets = [0, 0], sizes = [1, 128], strides = [1, 1]} : vector<2x128xf32> to vector<1x128xf32>
    %16 = vector.extract_strided_slice %2 {offsets = [1, 0], sizes = [1, 128], strides = [1, 1]} : vector<2x128xf32> to vector<1x128xf32>
    %17 = arith.mulf %15, %16 : vector<1x128xf32>
    %18 = vector.extract_strided_slice %4 {offsets = [0, 0], sizes = [1, 128], strides = [1, 1]} : vector<2x128xf32> to vector<1x128xf32>
    %19 = vector.extract_strided_slice %4 {offsets = [1, 0], sizes = [1, 128], strides = [1, 1]} : vector<2x128xf32> to vector<1x128xf32>
    %20 = arith.mulf %18, %19 : vector<1x128xf32>
    %21 = arith.subf %14, %11 : vector<2x128xf32>
    %22 = vector.extract_strided_slice %21 {offsets = [0, 0], sizes = [1, 128], strides = [1, 1]} : vector<2x128xf32> to vector<1x128xf32>
    %cst_2 = arith.constant 0.000000e+00 : f32
    %23 = vector.broadcast %cst_2 : f32 to vector<1x128xf32>
    %24 = arith.cmpf ogt, %22, %23 : vector<1x128xf32>
    %25 = vector.extract_strided_slice %21 {offsets = [1, 0], sizes = [1, 128], strides = [1, 1]} : vector<2x128xf32> to vector<1x128xf32>
    %cst_3 = arith.constant 0.000000e+00 : f32
    %26 = vector.broadcast %cst_3 : f32 to vector<1x128xf32>
    %27 = arith.cmpf ogt, %25, %26 : vector<1x128xf32>
    %28 = arith.andi %24, %27 : vector<1x128xi1>
    %29 = vector.extract_strided_slice %21 {offsets = [0, 0], sizes = [1, 128], strides = [1, 1]} : vector<2x128xf32> to vector<1x128xf32>
    %30 = vector.extract_strided_slice %21 {offsets = [1, 0], sizes = [1, 128], strides = [1, 1]} : vector<2x128xf32> to vector<1x128xf32>
    %31 = arith.mulf %29, %30 : vector<1x128xf32>
    %cst_4 = arith.constant 0.000000e+00 : f32
    %32 = vector.broadcast %cst_4 : f32 to vector<1x128xf32>
    %33 = arith.select %28, %31, %32 : vector<1x128xi1>, vector<1x128xf32>
    %34 = arith.addf %17, %20 : vector<1x128xf32>
    %35 = arith.subf %34, %33 : vector<1x128xf32>
    %cst_5 = arith.constant 1.000000e-16 : f32
    %36 = vector.broadcast %cst_5 : f32 to vector<1x128xf32>
    %37 = arith.addf %35, %36 : vector<1x128xf32>
    %38 = arith.divf %33, %37 : vector<1x128xf32>
    %39 = arith.mulf %38, %38 : vector<1x128xf32>
    %cst_6 = arith.constant 1.000000e+00 : f32
    %40 = vector.broadcast %cst_6 : f32 to vector<1x128xf32>
    %41 = arith.subf %40, %39 : vector<1x128xf32>
    %c0_7 = arith.constant 0 : index
    %c0_8 = arith.constant 0 : index
    %42 = vector.load %arg2[%c0_7, %c0_8] : memref<1x128xf32, #tpu.memory_space<vmem>>, vector<1x128xf32>
    tpu.vector_store %arg2[%c0_7, %c0_8], %41 {strides = array<i32>} : memref<1x128xf32, #tpu.memory_space<vmem>>, vector<1x128xf32>,
    return
  }
  func.func @transform_0(%arg0: i32) -> (i32, i32) {
    %c0_i32 = arith.constant 0 : i32
    %c0_i32_0 = arith.constant 0 : i32
    return %c0_i32, %arg0 : i32, i32
  }
  func.func @transform_1(%arg0: i32) -> (i32, i32) {
    %c0_i32 = arith.constant 0 : i32
    %c0_i32_0 = arith.constant 0 : i32
    return %c0_i32, %arg0 : i32, i32
  }
}

</mosaic_0001>

<llo_original>
// kernel: tpu_custom_call.1
$region0: #{tpu_custom_call.1}
  #allocation0 [shape = 'u32[]', space=smem, size = 0x4, offset = 0x4, fixed_abs, tag = 'smem constant byte address 0x4 - core index']
  #allocation1 [shape = 'u32[144,128]{1,0:T(1,128)}', space=vmem, size = 0x12000, scoped, tag = 'internal scratch']
  %s0 = inlined_call_operand.hbm [shape: f32[8,128], index: 0, kind: input, shape index: {}]
  %s1 = inlined_call_operand.hbm [shape: f32[1,128], index: 1, kind: output, shape index: {}]
  %s2 = sld [smem:[#allocation0]]
  $region18: #{tpu_custom_call.1} parent=0
    _
  %s4 = ssub.s32 1, %s2
  %s5 = scalar_select 0, %s4, %s2
  $region1: #{tpu_custom_call.1} parent=0
    #allocation2 [shape = 'u8[4096]{0}', space=vmem, size = 0x1000, scoped, tag = 'input window, operand 0, single buffered']
    #allocation3 [shape = 's32[1]{0}', space=sflag, size = 0x4, scoped, tag = 'scoped memory for tpu_custom_call.1']
    #allocation4 [shape = 's32[1]{0}', space=sflag, size = 0x4, scoped, tag = 'scoped memory for tpu_custom_call.1']
    #allocation5 [shape = 'u8[512]{0}', space=vmem, size = 0x400, scoped, tag = 'output window, operand 0, single buffered']
    %6 = vsyncpa [#allocation3], 0
    %7 = vsyncpa [#allocation4], 0
    // Predicated region
    $region2: #{tpu_custom_call.1} parent=1 // pred_check
      _
    $region3: #{tpu_custom_call.1} parent=1 // pred_check_branch
      %9 = sbr.rel (0) target = $region5
    $region4: #{tpu_custom_call.1} parent=1 // pred_region
      %s11 = ssub.s32 128, 128
      %12 = vsyncadd [#allocation3], %s11
      %s14 = sshll.u32 [#allocation2], 4
      %s15 = int_to_ptr.vmem [resolvable:$true] %s14
      %17 = dma.hbm_to_vmem [thread:$0]  %s0, 128, %s15, [#allocation3]
    $region5: #{tpu_custom_call.1} parent=1 // pred_fallthru
      _
    // Predicated region
    $region6: #{tpu_custom_call.1} parent=1 // pred_check
      _
    $region7: #{tpu_custom_call.1} parent=1 // pred_check_branch
      %19 = sbr.rel (0) target = $region9
    $region8: #{tpu_custom_call.1} parent=1 // pred_region
      %20 = dma.done [#allocation3], 128
    $region9: #{tpu_custom_call.1} parent=1 // pred_fallthru
      _
    %v21 = vld [vmem:[#allocation2] sm:$0xff]
    %v22 = vmul.f32 %v21, 0.5
    %v24 = vrot.slane %v22, 2
    %v26 = vsub.f32 %v21, %v24
    %v28 = vrot.slane %v26, 4
    %v30 = vmax.f32 %v26, %v28
    %v31 = vadd.f32 %v21, %v24
    %v33 = vrot.slane %v31, 4
    %v35 = vmin.f32 %v31, %v33
    %v37 = vrot.slane %v21, 1
    %v39 = vmul.f32 %v21, %v37
    %v40 = vsub.f32 %v35, %v30
    %vm41 = vcmp.gt.f32.partialorder %v40, 0.0
    %v42 = vsel %vm41, 1, 0
    %v43 = vrot.slane %v42, 1
    %vm44 = vcmp.ne.s32.totalorder %v43, 0
    %vm45 = vmand %vm41, %vm44
    %v47 = vrot.slane %v40, 1
    %v49 = vmul.f32 %v40, %v47
    %v50 = vsel %vm45, %v49, 0.0
    %v52 = vrot.slane %v39, 4
    %v54 = vadd.f32 %v39, %v52
    %v56 = vrot.slane %v50, 6
    %v58 = vsub.f32 %v54, %v56
    %v59 = vadd.f32 %v58, 1e-16
    %v61 = vrot.slane %v59, 2
    %v63 = vrcp.pop %v61
    %v64 = vmul.f32 %v50, %v63
    %v65 = vmul.f32 %v64, %v64
    %v66 = vsub.f32 1.0, %v65
    %67 = vst [vmem:[#allocation5] sm:$0x1] %v66
    // Predicated region
    $region10: #{tpu_custom_call.1} parent=1 // pred_check
      _
    $region11: #{tpu_custom_call.1} parent=1 // pred_check_branch
      %69 = sbr.rel (0) target = $region13
    $region12: #{tpu_custom_call.1} parent=1 // pred_region
      %s71 = ssub.s32 16, 16
      %72 = vsyncadd [#allocation4], %s71
      %s74 = sshll.u32 [#allocation5], 4
      %s75 = int_to_ptr.vmem [resolvable:$true] %s74
      %77 = dma.vmem_to_hbm [thread:$0]  %s75, 16, %s1, [#allocation4]
    $region13: #{tpu_custom_call.1} parent=1 // pred_fallthru
      _
    // Predicated region
    $region14: #{tpu_custom_call.1} parent=1 // pred_check
      _
    $region15: #{tpu_custom_call.1} parent=1 // pred_check_branch
      %79 = sbr.rel (0) target = $region17
    $region16: #{tpu_custom_call.1} parent=1 // pred_region
      %80 = dma.done [#allocation4], 16
    $region17: #{tpu_custom_call.1} parent=1 // pred_fallthru
      _
    %81 = vsyncpa [#allocation3], 1
    %82 = vsyncpa [#allocation4], 1

</llo_original>
